<compile_context>
chip_gen: v7x
topology: tpu7x:2x2x1
jax: 0.10.0
libtpu: 0.0.40
codegen_flags: <defaults>
</compile_context>

<pallas_src>
import jax
import jax.numpy as jnp
from jax.experimental import pallas as pl
from jax.experimental.pallas import tpu as pltpu


def _mlp_kernel(xT_ref, w1_ref, b1_ref, w2_ref, b2_ref, w3_ref, b3_ref,
                w4_ref, b4_ref, oT_ref):
    xT = xT_ref[...]                                                   # (13, TB)

    h = jnp.dot(w1_ref[...], xT, preferred_element_type=jnp.float32) + b1_ref[...]
    h = jnp.maximum(h, 0.0)                                            # (32, TB)

    h = jnp.dot(w2_ref[...], h, preferred_element_type=jnp.float32) + b2_ref[...]
    h = jnp.maximum(h, 0.0)                                            # (16, TB)

    h = jnp.dot(w3_ref[...], h, preferred_element_type=jnp.float32) + b3_ref[...]
    h = jnp.maximum(h, 0.0)                                            # (8, TB)

    out = jnp.dot(w4_ref[...], h, preferred_element_type=jnp.float32) + b4_ref[...]
    oT_ref[...] = out.astype(oT_ref.dtype)                             # (1, TB) lane-dense


def _round_up(n, m):
    return ((n + m - 1) // m) * m


def deeper_water_level_nn(x, params, *, tile_b=1024):
    """x: (B, 13) float32.  params: PyTorch-layout weights w_i=(out,in), b_i=(out,1)."""
    B, F = x.shape

    # Lane-aligned batch tile; small batches use a single 128-wide tile.
    TB = min(tile_b, _round_up(max(B, 1), 128))
    B_pad = _round_up(B, TB)
    num_tiles = B_pad // TB

    # Pad batch with zero rows, put batch on the lane (last) axis.
    x_pad = jnp.pad(x, ((0, B_pad - B), (0, 0)))
    xT = x_pad.T                                                       # (F, B_pad)

    w1, b1 = params["w1"], params["b1"]
    w2, b2 = params["w2"], params["b2"]
    w3, b3 = params["w3"], params["b3"]
    w4, b4 = params["w4"], params["b4"]

    def _resident(arr):
        # Full-shape block, constant block index -> stays in VMEM across the grid.
        return pl.BlockSpec(arr.shape, lambda i: (0, 0))

    in_specs = [pl.BlockSpec((F, TB), lambda i: (0, i))] + [
        _resident(a) for a in (w1, b1, w2, b2, w3, b3, w4, b4)
    ]

    outT = pl.pallas_call(
        _mlp_kernel,
        out_shape=jax.ShapeDtypeStruct((1, B_pad), jnp.float32),
        grid=(num_tiles,),
        in_specs=in_specs,
        out_specs=pl.BlockSpec((1, TB), lambda i: (0, i)),
        compiler_params=pltpu.CompilerParams(
            dimension_semantics=("parallel",),
        ),
    )(xT, w1, b1, w2, b2, w3, b3, w4, b4)

    return outT[0, :B][:, None]                                        # (B, 1)


def init_params(key, input_features=13):
    """Deterministic init matching PyTorch nn.Linear: w=(out,in), b=(out,1)."""
    dims = [(input_features, 32), (32, 16), (16, 8), (8, 1)]
    params = {}
    for i, (fan_in, fan_out) in enumerate(dims, start=1):
        key, kw, kb = jax.random.split(key, 3)
        bound = float(fan_in) ** -0.5
        params[f"w{i}"] = jax.random.uniform(
            kw, (fan_out, fan_in), jnp.float32, -bound, bound)
        params[f"b{i}"] = jax.random.uniform(
            kb, (fan_out, 1), jnp.float32, -bound, bound)
    return params


def _reference(x, p):
    # Same transposed formulation as the kernel (mathematically == x @ W.T + b).
    hT = jnp.maximum(p["w1"] @ x.T + p["b1"], 0.0)
    hT = jnp.maximum(p["w2"] @ hT + p["b2"], 0.0)
    hT = jnp.maximum(p["w3"] @ hT + p["b3"], 0.0)
    outT = p["w4"] @ hT + p["b4"]
    return outT.T


if __name__ == "__main__":
    key = jax.random.PRNGKey(0)
    key, kx = jax.random.split(key)

    batch = 8
    input_features = 13
    x = jax.random.normal(kx, (batch, input_features), dtype=jnp.float32)

    params = init_params(key, input_features)

    out = deeper_water_level_nn(x, params)
    out = jax.block_until_ready(out)

    ref = _reference(x, params)
    assert out.shape == (batch, 1)
    assert jnp.allclose(out, ref, atol=1e-4, rtol=1e-4), (
        f"max abs err {float(jnp.max(jnp.abs(out - ref)))}")

    print("KERNEL_OK")
</pallas_src>

<mosaic_0001>
module attributes {stable_mosaic.version = 11 : i64} {
  func.func @_mlp_kernel(%arg0: i32, %arg1: memref<13x128xf32, #tpu.memory_space<vmem>>, %arg2: memref<32x13xf32, #tpu.memory_space<vmem>>, %arg3: memref<32x1xf32, #tpu.memory_space<vmem>>, %arg4: memref<16x32xf32, #tpu.memory_space<vmem>>, %arg5: memref<16x1xf32, #tpu.memory_space<vmem>>, %arg6: memref<8x16xf32, #tpu.memory_space<vmem>>, %arg7: memref<8x1xf32, #tpu.memory_space<vmem>>, %arg8: memref<1x8xf32, #tpu.memory_space<vmem>>, %arg9: memref<1x1xf32, #tpu.memory_space<vmem>>, %arg10: memref<1x128xf32, #tpu.memory_space<vmem>>) attributes {dimension_semantics = [#tpu.dimension_semantics<parallel>], iteration_bounds = array<i64: 1>, scalar_prefetch = 0 : i64, scratch_operands = 0 : i64, tpu.core_type = #tpu.core_type<tc>, window_params = [{transform_indices = @transform_0, window_bounds = array<i64: 13, 128>}, {pipeline_mode = #tpu.pipeline_mode<synchronous>, transform_indices = @transform_1, window_bounds = array<i64: 32, 13>}, {pipeline_mode = #tpu.pipeline_mode<synchronous>, transform_indices = @transform_2, window_bounds = array<i64: 32, 1>}, {pipeline_mode = #tpu.pipeline_mode<synchronous>, transform_indices = @transform_3, window_bounds = array<i64: 16, 32>}, {pipeline_mode = #tpu.pipeline_mode<synchronous>, transform_indices = @transform_4, window_bounds = array<i64: 16, 1>}, {pipeline_mode = #tpu.pipeline_mode<synchronous>, transform_indices = @transform_5, window_bounds = array<i64: 8, 16>}, {pipeline_mode = #tpu.pipeline_mode<synchronous>, transform_indices = @transform_6, window_bounds = array<i64: 8, 1>}, {pipeline_mode = #tpu.pipeline_mode<synchronous>, transform_indices = @transform_7, window_bounds = array<i64: 1, 8>}, {pipeline_mode = #tpu.pipeline_mode<synchronous>, transform_indices = @transform_8, window_bounds = array<i64: 1, 1>}, {transform_indices = @transform_9, window_bounds = array<i64: 1, 128>}]} {
    %c0 = arith.constant 0 : index
    %c0_0 = arith.constant 0 : index
    %0 = vector.load %arg1[%c0, %c0_0] : memref<13x128xf32, #tpu.memory_space<vmem>>, vector<13x128xf32>
    %c0_1 = arith.constant 0 : index
    %c0_2 = arith.constant 0 : index
    %1 = vector.load %arg2[%c0_1, %c0_2] : memref<32x13xf32, #tpu.memory_space<vmem>>, vector<32x13xf32>
    %cst = arith.constant dense<0.000000e+00> : vector<32x128xf32>
    %2 = tpu.matmul %1, %0, %cst {dimension_numbers = #tpu.dot_dimension_numbers<[1], [0], [0], [1], [0, 0, 1, 1], [], []>} : vector<32x13xf32>, vector<13x128xf32>, vector<32x128xf32> -> vector<32x128xf32>
    %c0_3 = arith.constant 0 : index
    %c0_4 = arith.constant 0 : index
    %3 = vector.load %arg3[%c0_3, %c0_4] : memref<32x1xf32, #tpu.memory_space<vmem>>, vector<32x1xf32>
    %4 = vector.broadcast %3 : vector<32x1xf32> to vector<32x128xf32>
    %5 = arith.addf %2, %4 : vector<32x128xf32>
    %cst_5 = arith.constant 0.000000e+00 : f32
    %6 = vector.broadcast %cst_5 : f32 to vector<32x128xf32>
    %7 = arith.maximumf %5, %6 : vector<32x128xf32>
    %c0_6 = arith.constant 0 : index
    %c0_7 = arith.constant 0 : index
    %8 = vector.load %arg4[%c0_6, %c0_7] : memref<16x32xf32, #tpu.memory_space<vmem>>, vector<16x32xf32>
    %cst_8 = arith.constant dense<0.000000e+00> : vector<16x128xf32>
    %9 = tpu.matmul %8, %7, %cst_8 {dimension_numbers = #tpu.dot_dimension_numbers<[1], [0], [0], [1], [0, 0, 1, 1], [], []>} : vector<16x32xf32>, vector<32x128xf32>, vector<16x128xf32> -> vector<16x128xf32>
    %c0_9 = arith.constant 0 : index
    %c0_10 = arith.constant 0 : index
    %10 = vector.load %arg5[%c0_9, %c0_10] : memref<16x1xf32, #tpu.memory_space<vmem>>, vector<16x1xf32>
    %11 = vector.broadcast %10 : vector<16x1xf32> to vector<16x128xf32>
    %12 = arith.addf %9, %11 : vector<16x128xf32>
    %cst_11 = arith.constant 0.000000e+00 : f32
    %13 = vector.broadcast %cst_11 : f32 to vector<16x128xf32>
    %14 = arith.maximumf %12, %13 : vector<16x128xf32>
    %c0_12 = arith.constant 0 : index
    %c0_13 = arith.constant 0 : index
    %15 = vector.load %arg6[%c0_12, %c0_13] : memref<8x16xf32, #tpu.memory_space<vmem>>, vector<8x16xf32>
    %cst_14 = arith.constant dense<0.000000e+00> : vector<8x128xf32>
    %16 = tpu.matmul %15, %14, %cst_14 {dimension_numbers = #tpu.dot_dimension_numbers<[1], [0], [0], [1], [0, 0, 1, 1], [], []>} : vector<8x16xf32>, vector<16x128xf32>, vector<8x128xf32> -> vector<8x128xf32>
    %c0_15 = arith.constant 0 : index
    %c0_16 = arith.constant 0 : index
    %17 = vector.load %arg7[%c0_15, %c0_16] : memref<8x1xf32, #tpu.memory_space<vmem>>, vector<8x1xf32>
    %18 = vector.broadcast %17 : vector<8x1xf32> to vector<8x128xf32>
    %19 = arith.addf %16, %18 : vector<8x128xf32>
    %cst_17 = arith.constant 0.000000e+00 : f32
    %20 = vector.broadcast %cst_17 : f32 to vector<8x128xf32>
    %21 = arith.maximumf %19, %20 : vector<8x128xf32>
    %c0_18 = arith.constant 0 : index
    %c0_19 = arith.constant 0 : index
    %22 = vector.load %arg8[%c0_18, %c0_19] : memref<1x8xf32, #tpu.memory_space<vmem>>, vector<1x8xf32>
    %cst_20 = arith.constant dense<0.000000e+00> : vector<1x128xf32>
    %23 = tpu.matmul %22, %21, %cst_20 {dimension_numbers = #tpu.dot_dimension_numbers<[1], [0], [0], [1], [0, 0, 1, 1], [], []>} : vector<1x8xf32>, vector<8x128xf32>, vector<1x128xf32> -> vector<1x128xf32>
    %c0_21 = arith.constant 0 : index
    %c0_22 = arith.constant 0 : index
    %24 = vector.load %arg9[%c0_21, %c0_22] : memref<1x1xf32, #tpu.memory_space<vmem>>, vector<1x1xf32>
    %25 = vector.broadcast %24 : vector<1x1xf32> to vector<1x128xf32>
    %26 = arith.addf %23, %25 : vector<1x128xf32>
    %c0_23 = arith.constant 0 : index
    %c0_24 = arith.constant 0 : index
    %27 = vector.load %arg10[%c0_23, %c0_24] : memref<1x128xf32, #tpu.memory_space<vmem>>, vector<1x128xf32>
    tpu.vector_store %arg10[%c0_23, %c0_24], %26 {strides = array<i32>} : memref<1x128xf32, #tpu.memory_space<vmem>>, vector<1x128xf32>,
    return
  }
  func.func @transform_0(%arg0: i32) -> (i32, i32) {
    %c0_i32 = arith.constant 0 : i32
    %c0_i32_0 = arith.constant 0 : i32
    return %c0_i32, %arg0 : i32, i32
  }
  func.func @transform_1(%arg0: i32) -> (i32, i32) {
    %c0_i32 = arith.constant 0 : i32
    %c0_i32_0 = arith.constant 0 : i32
    %c0_i32_1 = arith.constant 0 : i32
    return %c0_i32, %c0_i32_0 : i32, i32
  }
  func.func @transform_2(%arg0: i32) -> (i32, i32) {
    %c0_i32 = arith.constant 0 : i32
    %c0_i32_0 = arith.constant 0 : i32
    %c0_i32_1 = arith.constant 0 : i32
    return %c0_i32, %c0_i32_0 : i32, i32
  }
  func.func @transform_3(%arg0: i32) -> (i32, i32) {
    %c0_i32 = arith.constant 0 : i32
    %c0_i32_0 = arith.constant 0 : i32
    %c0_i32_1 = arith.constant 0 : i32
    return %c0_i32, %c0_i32_0 : i32, i32
  }
  func.func @transform_4(%arg0: i32) -> (i32, i32) {
    %c0_i32 = arith.constant 0 : i32
    %c0_i32_0 = arith.constant 0 : i32
    %c0_i32_1 = arith.constant 0 : i32
    return %c0_i32, %c0_i32_0 : i32, i32
  }
  func.func @transform_5(%arg0: i32) -> (i32, i32) {
    %c0_i32 = arith.constant 0 : i32
    %c0_i32_0 = arith.constant 0 : i32
    %c0_i32_1 = arith.constant 0 : i32
    return %c0_i32, %c0_i32_0 : i32, i32
  }
  func.func @transform_6(%arg0: i32) -> (i32, i32) {
    %c0_i32 = arith.constant 0 : i32
    %c0_i32_0 = arith.constant 0 : i32
    %c0_i32_1 = arith.constant 0 : i32
    return %c0_i32, %c0_i32_0 : i32, i32
  }
  func.func @transform_7(%arg0: i32) -> (i32, i32) {
    %c0_i32 = arith.constant 0 : i32
    %c0_i32_0 = arith.constant 0 : i32
    %c0_i32_1 = arith.constant 0 : i32
    return %c0_i32, %c0_i32_0 : i32, i32
  }
  func.func @transform_8(%arg0: i32) -> (i32, i32) {
    %c0_i32 = arith.constant 0 : i32
    %c0_i32_0 = arith.constant 0 : i32
    %c0_i32_1 = arith.constant 0 : i32
    return %c0_i32, %c0_i32_0 : i32, i32
  }
  func.func @transform_9(%arg0: i32) -> (i32, i32) {
    %c0_i32 = arith.constant 0 : i32
    %c0_i32_0 = arith.constant 0 : i32
    return %c0_i32, %arg0 : i32, i32
  }
}

</mosaic_0001>

<llo_original>
// kernel: tpu_custom_call.1
$region0: #{tpu_custom_call.1}
  #allocation0 [shape = 'u32[]', space=smem, size = 0x4, offset = 0x4, fixed_abs, tag = 'smem constant byte address 0x4 - core index']
  #allocation1 [shape = 'u32[144,128]{1,0:T(1,128)}', space=vmem, size = 0x12000, scoped, tag = 'internal scratch']
  #allocation2 [shape = 'f32[1,1]{1,0:T(1,128)S(1)}', space=vmem, size = 0x200, scoped, tag = 'scoped memory for tpu_custom_call.1']
  %s0 = inlined_call_operand.vmem [shape: f32[13,128], index: 0, kind: input, shape index: {}]
  %s1 = inlined_call_operand.vmem [shape: f32[32,13], index: 1, kind: input, shape index: {}]
  %s2 = inlined_call_operand.vmem [shape: f32[32,1], index: 2, kind: input, shape index: {}]
  %s3 = inlined_call_operand.vmem [shape: f32[16,32], index: 3, kind: input, shape index: {}]
  %s4 = inlined_call_operand.vmem [shape: f32[16,1], index: 4, kind: input, shape index: {}]
  %s5 = inlined_call_operand.vmem [shape: f32[8,16], index: 5, kind: input, shape index: {}]
  %s6 = inlined_call_operand.vmem [shape: f32[8,1], index: 6, kind: input, shape index: {}]
  %s7 = inlined_call_operand.vmem [shape: f32[1,8], index: 7, kind: input, shape index: {}]
  %s8 = inlined_call_operand.<no memory space> [shape: f32[1,1], index: 8, kind: input, shape index: {}]
  %s9 = inlined_call_operand.hbm [shape: f32[1,128], index: 9, kind: output, shape index: {}]
  %s10 = sld [smem:[#allocation0]]
  $region46: #{tpu_custom_call.1} parent=0
    _
  %s12 = ssub.s32 1, %s10
  %s13 = scalar_select 0, %s12, %s10
  %v14 = vstv %s8
  %15 = vst [vmem:[#allocation2] sm:$0x1] %v14
  $region1: #{tpu_custom_call.1} parent=0
    #allocation3 [shape = 'u8[512]{0}', space=vmem, size = 0x400, scoped, tag = 'output window, operand 0, single buffered']
    #allocation4 [shape = 's32[1]{0}', space=sflag, size = 0x4, scoped, tag = 'scoped memory for tpu_custom_call.1']
    %16 = vsyncpa [#allocation4], 0
    // Predicated region
    $region2: #{tpu_custom_call.1} parent=1 // pred_check
      _
    $region3: #{tpu_custom_call.1} parent=1 // pred_check_branch
      %18 = sbr.rel (0) target = $region5
    $region4: #{tpu_custom_call.1} parent=1 // pred_region
      _
    $region5: #{tpu_custom_call.1} parent=1 // pred_fallthru
      _
    // Predicated region
    $region6: #{tpu_custom_call.1} parent=1 // pred_check
      _
    $region7: #{tpu_custom_call.1} parent=1 // pred_check_branch
      %20 = sbr.rel (0) target = $region9
    $region8: #{tpu_custom_call.1} parent=1 // pred_region
      _
    $region9: #{tpu_custom_call.1} parent=1 // pred_fallthru
      _
    // Predicated region
    $region10: #{tpu_custom_call.1} parent=1 // pred_check
      _
    $region11: #{tpu_custom_call.1} parent=1 // pred_check_branch
      %22 = sbr.rel (0) target = $region13
    $region12: #{tpu_custom_call.1} parent=1 // pred_region
      _
    $region13: #{tpu_custom_call.1} parent=1 // pred_fallthru
      _
    // Predicated region
    $region14: #{tpu_custom_call.1} parent=1 // pred_check
      _
    $region15: #{tpu_custom_call.1} parent=1 // pred_check_branch
      %24 = sbr.rel (0) target = $region17
    $region16: #{tpu_custom_call.1} parent=1 // pred_region
      _
    $region17: #{tpu_custom_call.1} parent=1 // pred_fallthru
      _
    // Predicated region
    $region18: #{tpu_custom_call.1} parent=1 // pred_check
      _
    $region19: #{tpu_custom_call.1} parent=1 // pred_check_branch
      %26 = sbr.rel (0) target = $region21
    $region20: #{tpu_custom_call.1} parent=1 // pred_region
      _
    $region21: #{tpu_custom_call.1} parent=1 // pred_fallthru
      _
    // Predicated region
    $region22: #{tpu_custom_call.1} parent=1 // pred_check
      _
    $region23: #{tpu_custom_call.1} parent=1 // pred_check_branch
      %28 = sbr.rel (0) target = $region25
    $region24: #{tpu_custom_call.1} parent=1 // pred_region
      _
    $region25: #{tpu_custom_call.1} parent=1 // pred_fallthru
      _
    // Predicated region
    $region26: #{tpu_custom_call.1} parent=1 // pred_check
      _
    $region27: #{tpu_custom_call.1} parent=1 // pred_check_branch
      %30 = sbr.rel (0) target = $region29
    $region28: #{tpu_custom_call.1} parent=1 // pred_region
      _
    $region29: #{tpu_custom_call.1} parent=1 // pred_fallthru
      _
    // Predicated region
    $region30: #{tpu_custom_call.1} parent=1 // pred_check
      _
    $region31: #{tpu_custom_call.1} parent=1 // pred_check_branch
      %32 = sbr.rel (0) target = $region33
    $region32: #{tpu_custom_call.1} parent=1 // pred_region
      _
    $region33: #{tpu_custom_call.1} parent=1 // pred_fallthru
      _
    // Predicated region
    $region34: #{tpu_custom_call.1} parent=1 // pred_check
      _
    $region35: #{tpu_custom_call.1} parent=1 // pred_check_branch
      %34 = sbr.rel (0) target = $region37
    $region36: #{tpu_custom_call.1} parent=1 // pred_region
      _
    $region37: #{tpu_custom_call.1} parent=1 // pred_fallthru
      _
    %v35 = vld [vmem:[%s0] sm:$0xff]
    %v36 = vld [vmem:[%s0 + $0x8] sm:$0x1f]
    %v37 = vld [vmem:[%s1] sm:$0xff]
    %v38 = vld [vmem:[%s1 + $0x8] sm:$0xff]
    %v39 = vld [vmem:[%s1 + $0x10] sm:$0xff]
    %v40 = vld [vmem:[%s1 + $0x18] sm:$0xff]
    %v41 = vld [vmem:[%s2] sm:$0xff]
    %v42 = vld [vmem:[%s2 + $0x8] sm:$0xff]
    %v43 = vld [vmem:[%s2 + $0x10] sm:$0xff]
    %v44 = vld [vmem:[%s2 + $0x18] sm:$0xff]
    %46 = vset.pattern.permute.xlu0 0
    %47 = vperm.xlu0 %46, %v41
    %v48 = vpop.permute.xlu0 %47
    %51 = vset.pattern.permute.xlu0 0
    %52 = vperm.xlu0 %51, %v42
    %v53 = vpop.permute.xlu0 %52
    %56 = vset.pattern.permute.xlu0 0
    %57 = vperm.xlu0 %56, %v43
    %v58 = vpop.permute.xlu0 %57
    %61 = vset.pattern.permute.xlu0 0
    %62 = vperm.xlu0 %61, %v44
    %v63 = vpop.permute.xlu0 %62
    %vm65 = vcmask 105472
    %v67 = vsel %vm65, %v37, 0
    %v70 = vsel %vm65, %v38, 0
    %v73 = vsel %vm65, %v39, 0
    %v76 = vsel %vm65, %v40, 0
    %vm78 = vcmask 1044480
    %v80 = vsel %vm78, %v36, 0
    %82 = vmatprep.subr.mxu0 0.0
    %83 = vmatpush1.msra.mxu0 %v35
    %84 = vmatprep.subr.mxu0 0.0
    %85 = vmatpush1.msra.mxu0 %v80
    %86 = vmatprep.subr.mxu0 0.0
    %87 = vmatpush1.msra.mxu0 0.0
    %88 = vmatprep.subr.mxu0 0.0
    %89 = vmatpush1.msra.mxu0 0.0
    %90 = vmatprep.subr.mxu0 0.0
    %91 = vmatpush1.msra.mxu0 0.0
    %92 = vmatprep.subr.mxu0 0.0
    %93 = vmatpush1.msra.mxu0 0.0
    %94 = vmatprep.subr.mxu0 0.0
    %95 = vmatpush1.msra.mxu0 0.0
    %96 = vmatprep.subr.mxu0 0.0
    %97 = vmatpush1.msra.mxu0 0.0
    %98 = vmatprep.subr.mxu0 0.0
    %99 = vmatpush1.msra.mxu0 0.0
    %100 = vmatprep.subr.mxu0 0.0
    %101 = vmatpush1.msra.mxu0 0.0
    %102 = vmatprep.subr.mxu0 0.0
    %103 = vmatpush1.msra.mxu0 0.0
    %104 = vmatprep.subr.mxu0 0.0
    %105 = vmatpush1.msra.mxu0 0.0
    %106 = vmatprep.subr.mxu0 0.0
    %107 = vmatpush1.msra.mxu0 0.0
    %108 = vmatprep.subr.mxu0 0.0
    %109 = vmatpush1.msra.mxu0 0.0
    %110 = vmatprep.subr.mxu0 0.0
    %111 = vmatpush1.msra.mxu0 0.0
    %112 = vmatprep.subr.mxu0 0.0
    %113 = vmatpush1.msra.mxu0 0.0
    %114 = vmatprep.subr.mxu0 0.0
    %115 = vmatpush1.msra.mxu0 0.0
    %116 = vmatprep.subr.mxu0 0.0
    %117 = vmatpush1.msra.mxu0 0.0
    %118 = vmatprep.subr.mxu0 0.0
    %119 = vmatpush1.msra.mxu0 0.0
    %120 = vmatprep.subr.mxu0 0.0
    %121 = vmatpush1.msra.mxu0 0.0
    %122 = vmatprep.subr.mxu0 0.0
    %123 = vmatpush1.msra.mxu0 0.0
    %124 = vmatprep.subr.mxu0 0.0
    %125 = vmatpush1.msra.mxu0 0.0
    %126 = vmatprep.subr.mxu0 0.0
    %127 = vmatpush1.msra.mxu0 0.0
    %128 = vmatprep.subr.mxu0 0.0
    %129 = vmatpush1.msra.mxu0 0.0
    %130 = vmatprep.subr.mxu0 0.0
    %131 = vmatpush1.msra.mxu0 0.0
    %132 = vmatprep.subr.mxu0 0.0
    %133 = vmatpush1.msra.mxu0 0.0
    %134 = vmatprep.subr.mxu0 0.0
    %135 = vmatpush1.msra.mxu0 0.0
    %136 = vmatprep.subr.mxu0 0.0
    %137 = vmatpush1.msra.mxu0 0.0
    %138 = vmatprep.subr.mxu0 0.0
    %139 = vmatpush1.msra.mxu0 0.0
    %140 = vmatprep.subr.mxu0 0.0
    %141 = vmatpush1.msra.mxu0 0.0
    %142 = vmatprep.subr.mxu0 0.0
    %143 = vmatpush1.msra.mxu0 0.0
    %144 = vmatprep.subr.mxu0 0.0
    %145 = vmatpush1.msra.mxu0 0.0
    %146 = vmatprep.mubr.f32.mxu0 0.0
    %147 = vmatmul.mubr.f32.gmra.mrb[0].mxu0 %v67
    %v148 = vpop.f32.mrb[0].mxu0
    %v149 = vadd.f32 %v48, %v148
    %v150 = vpop.f32.mrb[0].mxu0
    %151 = vmatprep.mubr.f32.mxu0 0.0
    %152 = vmatmul.mubr.f32.gmra.mrb[0].mxu0 %v70
    %v153 = vpop.f32.mrb[0].mxu0
    %v154 = vadd.f32 %v53, %v153
    %v155 = vpop.f32.mrb[0].mxu0
    %156 = vmatprep.mubr.f32.mxu0 0.0
    %157 = vmatmul.mubr.f32.gmra.mrb[0].mxu0 %v73
    %v158 = vpop.f32.mrb[0].mxu0
    %v159 = vadd.f32 %v58, %v158
    %v160 = vpop.f32.mrb[0].mxu0
    %161 = vmatprep.mubr.f32.mxu0 0.0
    %162 = vmatmul.mubr.f32.gmra.mrb[0].mxu0 %v76
    %v163 = vpop.f32.mrb[0].mxu0
    %v164 = vadd.f32 %v63, %v163
    %v165 = vpop.f32.mrb[0].mxu0
    %166 = vdwg.mxu0
    %v167 = vmax.f32 %v149, 0.0
    %v168 = vmax.f32 %v154, 0.0
    %v169 = vmax.f32 %v159, 0.0
    %v170 = vmax.f32 %v164, 0.0
    %v171 = vld [vmem:[%s3] sm:$0xff]
    %v172 = vld [vmem:[%s3 + $0x8] sm:$0xff]
    %v173 = vld [vmem:[%s4] sm:$0xff]
    %v174 = vld [vmem:[%s4 + $0x8] sm:$0xff]
    %176 = vset.pattern.permute.xlu0 0
    %177 = vperm.xlu0 %176, %v173
    %v178 = vpop.permute.xlu0 %177
    %181 = vset.pattern.permute.xlu0 0
    %182 = vperm.xlu0 %181, %v174
    %v183 = vpop.permute.xlu0 %182
    %vm185 = vcmask 261120
    %v187 = vsel %vm185, %v171, 0
    %v190 = vsel %vm185, %v172, 0
    %192 = vmatprep.subr.mxu0 0.0
    %193 = vmatpush1.msra.mxu0 %v167
    %194 = vmatprep.subr.mxu0 0.0
    %195 = vmatpush1.msra.mxu0 %v168
    %196 = vmatprep.subr.mxu0 0.0
    %197 = vmatpush1.msra.mxu0 %v169
    %198 = vmatprep.subr.mxu0 0.0
    %199 = vmatpush1.msra.mxu0 %v170
    %200 = vmatprep.subr.mxu0 0.0
    %201 = vmatpush1.msra.mxu0 0.0
    %202 = vmatprep.subr.mxu0 0.0
    %203 = vmatpush1.msra.mxu0 0.0
    %204 = vmatprep.subr.mxu0 0.0
    %205 = vmatpush1.msra.mxu0 0.0
    %206 = vmatprep.subr.mxu0 0.0
    %207 = vmatpush1.msra.mxu0 0.0
    %208 = vmatprep.subr.mxu0 0.0
    %209 = vmatpush1.msra.mxu0 0.0
    %210 = vmatprep.subr.mxu0 0.0
    %211 = vmatpush1.msra.mxu0 0.0
    %212 = vmatprep.subr.mxu0 0.0
    %213 = vmatpush1.msra.mxu0 0.0
    %214 = vmatprep.subr.mxu0 0.0
    %215 = vmatpush1.msra.mxu0 0.0
    %216 = vmatprep.subr.mxu0 0.0
    %217 = vmatpush1.msra.mxu0 0.0
    %218 = vmatprep.subr.mxu0 0.0
    %219 = vmatpush1.msra.mxu0 0.0
    %220 = vmatprep.subr.mxu0 0.0
    %221 = vmatpush1.msra.mxu0 0.0
    %222 = vmatprep.subr.mxu0 0.0
    %223 = vmatpush1.msra.mxu0 0.0
    %224 = vmatprep.subr.mxu0 0.0
    %225 = vmatpush1.msra.mxu0 0.0
    %226 = vmatprep.subr.mxu0 0.0
    %227 = vmatpush1.msra.mxu0 0.0
    %228 = vmatprep.subr.mxu0 0.0
    %229 = vmatpush1.msra.mxu0 0.0
    %230 = vmatprep.subr.mxu0 0.0
    %231 = vmatpush1.msra.mxu0 0.0
    %232 = vmatprep.subr.mxu0 0.0
    %233 = vmatpush1.msra.mxu0 0.0
    %234 = vmatprep.subr.mxu0 0.0
    %235 = vmatpush1.msra.mxu0 0.0
    %236 = vmatprep.subr.mxu0 0.0
    %237 = vmatpush1.msra.mxu0 0.0
    %238 = vmatprep.subr.mxu0 0.0
    %239 = vmatpush1.msra.mxu0 0.0
    %240 = vmatprep.subr.mxu0 0.0
    %241 = vmatpush1.msra.mxu0 0.0
    %242 = vmatprep.subr.mxu0 0.0
    %243 = vmatpush1.msra.mxu0 0.0
    %244 = vmatprep.subr.mxu0 0.0
    %245 = vmatpush1.msra.mxu0 0.0
    %246 = vmatprep.subr.mxu0 0.0
    %247 = vmatpush1.msra.mxu0 0.0
    %248 = vmatprep.subr.mxu0 0.0
    %249 = vmatpush1.msra.mxu0 0.0
    %250 = vmatprep.subr.mxu0 0.0
    %251 = vmatpush1.msra.mxu0 0.0
    %252 = vmatprep.subr.mxu0 0.0
    %253 = vmatpush1.msra.mxu0 0.0
    %254 = vmatprep.subr.mxu0 0.0
    %255 = vmatpush1.msra.mxu0 0.0
    %256 = vmatprep.mubr.f32.mxu0 0.0
    %257 = vmatmul.mubr.f32.gmra.mrb[0].mxu0 %v187
    %v258 = vpop.f32.mrb[0].mxu0
    %v259 = vadd.f32 %v178, %v258
    %v260 = vpop.f32.mrb[0].mxu0
    %261 = vmatprep.mubr.f32.mxu0 0.0
    %262 = vmatmul.mubr.f32.gmra.mrb[0].mxu0 %v190
    %v263 = vpop.f32.mrb[0].mxu0
    %v264 = vadd.f32 %v183, %v263
    %v265 = vpop.f32.mrb[0].mxu0
    %266 = vdwg.mxu0
    %v267 = vmax.f32 %v259, 0.0
    %v268 = vmax.f32 %v264, 0.0
    %v269 = vld [vmem:[%s5] sm:$0xff]
    %v270 = vld [vmem:[%s6] sm:$0xff]
    %272 = vset.pattern.permute.xlu0 0
    %273 = vperm.xlu0 %272, %v270
    %v274 = vpop.permute.xlu0 %273
    %vm276 = vcmask 130048
    %v278 = vsel %vm276, %v269, 0
    %280 = vmatprep.subr.mxu0 0.0
    %281 = vmatpush1.msra.mxu0 %v267
    %282 = vmatprep.subr.mxu0 0.0
    %283 = vmatpush1.msra.mxu0 %v268
    %284 = vmatprep.subr.mxu0 0.0
    %285 = vmatpush1.msra.mxu0 0.0
    %286 = vmatprep.subr.mxu0 0.0
    %287 = vmatpush1.msra.mxu0 0.0
    %288 = vmatprep.subr.mxu0 0.0
    %289 = vmatpush1.msra.mxu0 0.0
    %290 = vmatprep.subr.mxu0 0.0
    %291 = vmatpush1.msra.mxu0 0.0
    %292 = vmatprep.subr.mxu0 0.0
    %293 = vmatpush1.msra.mxu0 0.0
    %294 = vmatprep.subr.mxu0 0.0
    %295 = vmatpush1.msra.mxu0 0.0
    %296 = vmatprep.subr.mxu0 0.0
    %297 = vmatpush1.msra.mxu0 0.0
    %298 = vmatprep.subr.mxu0 0.0
    %299 = vmatpush1.msra.mxu0 0.0
    %300 = vmatprep.subr.mxu0 0.0
    %301 = vmatpush1.msra.mxu0 0.0
    %302 = vmatprep.subr.mxu0 0.0
    %303 = vmatpush1.msra.mxu0 0.0
    %304 = vmatprep.subr.mxu0 0.0
    %305 = vmatpush1.msra.mxu0 0.0
    %306 = vmatprep.subr.mxu0 0.0
    %307 = vmatpush1.msra.mxu0 0.0
    %308 = vmatprep.subr.mxu0 0.0
    %309 = vmatpush1.msra.mxu0 0.0
    %310 = vmatprep.subr.mxu0 0.0
    %311 = vmatpush1.msra.mxu0 0.0
    %312 = vmatprep.subr.mxu0 0.0
    %313 = vmatpush1.msra.mxu0 0.0
    %314 = vmatprep.subr.mxu0 0.0
    %315 = vmatpush1.msra.mxu0 0.0
    %316 = vmatprep.subr.mxu0 0.0
    %317 = vmatpush1.msra.mxu0 0.0
    %318 = vmatprep.subr.mxu0 0.0
    %319 = vmatpush1.msra.mxu0 0.0
    %320 = vmatprep.subr.mxu0 0.0
    %321 = vmatpush1.msra.mxu0 0.0
    %322 = vmatprep.subr.mxu0 0.0
    %323 = vmatpush1.msra.mxu0 0.0
    %324 = vmatprep.subr.mxu0 0.0
    %325 = vmatpush1.msra.mxu0 0.0
    %326 = vmatprep.subr.mxu0 0.0
    %327 = vmatpush1.msra.mxu0 0.0
    %328 = vmatprep.subr.mxu0 0.0
    %329 = vmatpush1.msra.mxu0 0.0
    %330 = vmatprep.subr.mxu0 0.0
    %331 = vmatpush1.msra.mxu0 0.0
    %332 = vmatprep.subr.mxu0 0.0
    %333 = vmatpush1.msra.mxu0 0.0
    %334 = vmatprep.subr.mxu0 0.0
    %335 = vmatpush1.msra.mxu0 0.0
    %336 = vmatprep.subr.mxu0 0.0
    %337 = vmatpush1.msra.mxu0 0.0
    %338 = vmatprep.subr.mxu0 0.0
    %339 = vmatpush1.msra.mxu0 0.0
    %340 = vmatprep.subr.mxu0 0.0
    %341 = vmatpush1.msra.mxu0 0.0
    %342 = vmatprep.subr.mxu0 0.0
    %343 = vmatpush1.msra.mxu0 0.0
    %344 = vmatprep.mubr.f32.mxu0 0.0
    %345 = vmatmul.mubr.f32.gmra.mrb[0].mxu0 %v278
    %v346 = vpop.f32.mrb[0].mxu0
    %v347 = vadd.f32 %v274, %v346
    %v348 = vpop.f32.mrb[0].mxu0
    %349 = vdwg.mxu0
    %v350 = vmax.f32 %v347, 0.0
    %v351 = vld [vmem:[%s7] sm:$0x1]
    %v352 = vld [vmem:[#allocation2] sm:$0x1]
    %354 = vset.pattern.permute.xlu0 0
    %355 = vperm.xlu0 %354, %v352
    %v356 = vpop.permute.xlu0 %355
    %v358 = vlaneseq
    %v359 = vshrl.u32 %v358, 7
    %v360 = vsub.s32 0, %v359
    %v361 = vrot.slane %v356, %v360
    %vm362 = vcmask 64512
    %v364 = vsel %vm362, %v351, 0
    %366 = vmatprep.subr.mxu0 0.0
    %367 = vmatpush1.msra.mxu0 %v350
    %368 = vmatprep.subr.mxu0 0.0
    %369 = vmatpush1.msra.mxu0 0.0
    %370 = vmatprep.subr.mxu0 0.0
    %371 = vmatpush1.msra.mxu0 0.0
    %372 = vmatprep.subr.mxu0 0.0
    %373 = vmatpush1.msra.mxu0 0.0
    %374 = vmatprep.subr.mxu0 0.0
    %375 = vmatpush1.msra.mxu0 0.0
    %376 = vmatprep.subr.mxu0 0.0
    %377 = vmatpush1.msra.mxu0 0.0
    %378 = vmatprep.subr.mxu0 0.0
    %379 = vmatpush1.msra.mxu0 0.0
    %380 = vmatprep.subr.mxu0 0.0
    %381 = vmatpush1.msra.mxu0 0.0
    %382 = vmatprep.subr.mxu0 0.0
    %383 = vmatpush1.msra.mxu0 0.0
    %384 = vmatprep.subr.mxu0 0.0
    %385 = vmatpush1.msra.mxu0 0.0
    %386 = vmatprep.subr.mxu0 0.0
    %387 = vmatpush1.msra.mxu0 0.0
    %388 = vmatprep.subr.mxu0 0.0
    %389 = vmatpush1.msra.mxu0 0.0
    %390 = vmatprep.subr.mxu0 0.0
    %391 = vmatpush1.msra.mxu0 0.0
    %392 = vmatprep.subr.mxu0 0.0
    %393 = vmatpush1.msra.mxu0 0.0
    %394 = vmatprep.subr.mxu0 0.0
    %395 = vmatpush1.msra.mxu0 0.0
    %396 = vmatprep.subr.mxu0 0.0
    %397 = vmatpush1.msra.mxu0 0.0
    %398 = vmatprep.subr.mxu0 0.0
    %399 = vmatpush1.msra.mxu0 0.0
    %400 = vmatprep.subr.mxu0 0.0
    %401 = vmatpush1.msra.mxu0 0.0
    %402 = vmatprep.subr.mxu0 0.0
    %403 = vmatpush1.msra.mxu0 0.0
    %404 = vmatprep.subr.mxu0 0.0
    %405 = vmatpush1.msra.mxu0 0.0
    %406 = vmatprep.subr.mxu0 0.0
    %407 = vmatpush1.msra.mxu0 0.0
    %408 = vmatprep.subr.mxu0 0.0
    %409 = vmatpush1.msra.mxu0 0.0
    %410 = vmatprep.subr.mxu0 0.0
    %411 = vmatpush1.msra.mxu0 0.0
    %412 = vmatprep.subr.mxu0 0.0
    %413 = vmatpush1.msra.mxu0 0.0
    %414 = vmatprep.subr.mxu0 0.0
    %415 = vmatpush1.msra.mxu0 0.0
    %416 = vmatprep.subr.mxu0 0.0
    %417 = vmatpush1.msra.mxu0 0.0
    %418 = vmatprep.subr.mxu0 0.0
    %419 = vmatpush1.msra.mxu0 0.0
    %420 = vmatprep.subr.mxu0 0.0
    %421 = vmatpush1.msra.mxu0 0.0
    %422 = vmatprep.subr.mxu0 0.0
    %423 = vmatpush1.msra.mxu0 0.0
    %424 = vmatprep.subr.mxu0 0.0
    %425 = vmatpush1.msra.mxu0 0.0
    %426 = vmatprep.subr.mxu0 0.0
    %427 = vmatpush1.msra.mxu0 0.0
    %428 = vmatprep.subr.mxu0 0.0
    %429 = vmatpush1.msra.mxu0 0.0
    %430 = vmatprep.mubr.f32.mxu0 0.0
    %431 = vmatmul.mubr.f32.gmra.mrb[0].mxu0 %v364
    %v432 = vpop.f32.mrb[0].mxu0
    %v433 = vadd.f32 %v361, %v432
    %v434 = vpop.f32.mrb[0].mxu0
    %435 = vdwg.mxu0
    %436 = vst [vmem:[#allocation3] sm:$0x1] %v433
    // Predicated region
    $region38: #{tpu_custom_call.1} parent=1 // pred_check
      _
    $region39: #{tpu_custom_call.1} parent=1 // pred_check_branch
      %438 = sbr.rel (0) target = $region41
    $region40: #{tpu_custom_call.1} parent=1 // pred_region
      %s440 = ssub.s32 16, 16
      %441 = vsyncadd [#allocation4], %s440
      %s443 = sshll.u32 [#allocation3], 4
      %s444 = int_to_ptr.vmem [resolvable:$true] %s443
      %446 = dma.vmem_to_hbm [thread:$0]  %s444, 16, %s9, [#allocation4]
    $region41: #{tpu_custom_call.1} parent=1 // pred_fallthru
      _
    // Predicated region
    $region42: #{tpu_custom_call.1} parent=1 // pred_check
      _
    $region43: #{tpu_custom_call.1} parent=1 // pred_check_branch
      %448 = sbr.rel (0) target = $region45
    $region44: #{tpu_custom_call.1} parent=1 // pred_region
      %449 = dma.done [#allocation4], 16
    $region45: #{tpu_custom_call.1} parent=1 // pred_fallthru
      _
    %450 = vsyncpa [#allocation4], 1

</llo_original>
